<compile_context>
chip_gen: v5e
topology: v5e:2x2
jax: 0.10.0
libtpu: 0.0.40
codegen_flags: <defaults>
</compile_context>

<pallas_src>
import functools

import jax
import jax.numpy as jnp
from jax import lax
from jax.experimental import pallas as pl
from jax.experimental.pallas import tpu as pltpu


def _decoder_kernel(x_ref,
                    w1_ref, b1_ref,
                    w2_ref, b2_ref,
                    wf_ref, bf_ref,
                    out_ref, *, out1, out2):
    x = x_ref[...]

    # h = relu(fc1(x))
    h = jnp.dot(x, w1_ref[...], preferred_element_type=jnp.float32) + b1_ref[...]
    h = jnp.maximum(h, 0.0)

    # h = relu(fc2(h))
    h = jnp.dot(h, w2_ref[...], preferred_element_type=jnp.float32) + b2_ref[...]
    h = jnp.maximum(h, 0.0)

    # One fused, lane-dense matmul for fc3 | fc4 | fc5 (padded to 128 lanes).
    logits = jnp.dot(h, wf_ref[...], preferred_element_type=jnp.float32) + bf_ref[...]

    # Column-region masks over the padded slab:
    #   [0, out1)                  -> raw fc3 output
    #   [out1, out1+out2)          -> softmax region 1 (fc4)
    #   [out1+out2, out1+2*out2)   -> softmax region 2 (fc5)
    #   [out1+2*out2, n_pad)       -> zero padding
    col = lax.broadcasted_iota(jnp.int32, logits.shape, 1)
    mask_raw = col < out1
    mask1 = (col >= out1) & (col < out1 + out2)
    mask2 = (col >= out1 + out2) & (col < out1 + 2 * out2)

    # Per-region max (reductions only see the real softmax columns).
    m1 = jnp.max(jnp.where(mask1, logits, -jnp.inf), axis=-1, keepdims=True)
    m2 = jnp.max(jnp.where(mask2, logits, -jnp.inf), axis=-1, keepdims=True)
    shift = jnp.where(mask1, m1, jnp.where(mask2, m2, logits))
    e = jnp.exp(logits - shift)          # == 1 outside the softmax regions

    s1 = jnp.sum(jnp.where(mask1, e, 0.0), axis=-1, keepdims=True)
    s2 = jnp.sum(jnp.where(mask2, e, 0.0), axis=-1, keepdims=True)

    # EUP approximate reciprocal + one Newton step (keeps ~f32 accuracy).
    inv1 = pl.reciprocal(s1, approx=True)
    inv1 = inv1 * (2.0 - s1 * inv1)
    inv2 = pl.reciprocal(s2, approx=True)
    inv2 = inv2 * (2.0 - s2 * inv2)

    result = jnp.where(mask_raw, logits,
                       jnp.where(mask1, e * inv1,
                                 jnp.where(mask2, e * inv2, 0.0)))
    out_ref[...] = result                # single unmasked, lane-dense store


def decoder_forward(x, params, *, batch_tile=512):
    """x: [B, input_dim1] float32.  params: dict of (w, b) pairs ([in,out] / [1,out])."""
    B, in_dim = x.shape
    out1 = params["w3"].shape[1]
    out2 = params["w4"].shape[1]
    n_fused = out1 + 2 * out2
    n_pad = ((n_fused + 127) // 128) * 128        # lane-dense output slab width

    # Fuse fc3|fc4|fc5 weights/biases and zero-pad to the slab width.
    wf = jnp.concatenate([params["w3"], params["w4"], params["w5"]], axis=1)
    bf = jnp.concatenate([params["b3"], params["b4"], params["b5"]], axis=1)
    wf = jnp.pad(wf, ((0, 0), (0, n_pad - n_fused)))
    bf = jnp.pad(bf, ((0, 0), (0, n_pad - n_fused)))

    # Batch tile: multiple of 8 (or the whole batch when it is small).
    tb = min(batch_tile, B)
    if tb < B and tb % 8 != 0:
        tb = max(8, (tb // 8) * 8)
    grid = (pl.cdiv(B, tb),)

    def resident(shape):
        # Weights/biases: same block every grid step -> stay resident in VMEM.
        return pl.BlockSpec(shape, lambda i: (0, 0))

    kernel = functools.partial(_decoder_kernel, out1=out1, out2=out2)

    slab = pl.pallas_call(
        kernel,
        out_shape=jax.ShapeDtypeStruct((B, n_pad), jnp.float32),
        grid=grid,
        in_specs=[
            pl.BlockSpec((tb, in_dim), lambda i: (i, 0)),
            resident(params["w1"].shape), resident(params["b1"].shape),
            resident(params["w2"].shape), resident(params["b2"].shape),
            resident(wf.shape), resident(bf.shape),
        ],
        out_specs=pl.BlockSpec((tb, n_pad), lambda i: (i, 0)),
        compiler_params=pltpu.CompilerParams(
            dimension_semantics=("parallel",)),   # shards batch across TCs on v7x
    )(x, params["w1"], params["b1"], params["w2"], params["b2"], wf, bf)

    out = slab[:, :out1]
    probs1 = slab[:, out1:out1 + out2]
    probs2 = slab[:, out1 + out2:out1 + 2 * out2]
    return out, probs1, probs2


def init_params(key, input_dim1, hidden_dim, output_dim1, output_dim2):
    """Deterministic synthetic weights (Linear semantics: y = x @ W_t + b)."""
    dims = [
        ("1", input_dim1, hidden_dim),
        ("2", hidden_dim, hidden_dim),
        ("3", hidden_dim, output_dim1),
        ("4", hidden_dim, output_dim2),
        ("5", hidden_dim, output_dim2),
    ]
    params = {}
    for name, d_in, d_out in dims:
        key, kw, kb = jax.random.split(key, 3)
        scale = 1.0 / jnp.sqrt(d_in)
        params[f"w{name}"] = jax.random.uniform(
            kw, (d_in, d_out), jnp.float32, -scale, scale)
        params[f"b{name}"] = jax.random.uniform(
            kb, (1, d_out), jnp.float32, -scale, scale)
    return params


def reference_forward(x, p):
    h = jax.nn.relu(x @ p["w1"] + p["b1"])
    h = jax.nn.relu(h @ p["w2"] + p["b2"])
    out = h @ p["w3"] + p["b3"]
    probs1 = jax.nn.softmax(h @ p["w4"] + p["b4"], axis=-1)
    probs2 = jax.nn.softmax(h @ p["w5"] + p["b5"], axis=-1)
    return out, probs1, probs2


if __name__ == "__main__":
    B = 32
    input_dim1, hidden_dim, output_dim1, output_dim2 = 32, 64, 16, 8

    key = jax.random.PRNGKey(0)
    key, kx = jax.random.split(key)
    x = jax.random.normal(kx, (B, input_dim1), jnp.float32)
    params = init_params(key, input_dim1, hidden_dim, output_dim1, output_dim2)

    # batch_tile=8 exercises the multi-step batch grid at these small shapes.
    out, probs1, probs2 = decoder_forward(x, params, batch_tile=8)
    jax.block_until_ready((out, probs1, probs2))

    # Sanity check against plain-JAX reference.
    ref_out, ref_p1, ref_p2 = reference_forward(x, params)
    assert jnp.allclose(out, ref_out, atol=1e-4, rtol=1e-4)
    assert jnp.allclose(probs1, ref_p1, atol=1e-4, rtol=1e-4)
    assert jnp.allclose(probs2, ref_p2, atol=1e-4, rtol=1e-4)
    assert jnp.allclose(jnp.sum(probs1, axis=-1), 1.0, atol=1e-5)
    assert jnp.allclose(jnp.sum(probs2, axis=-1), 1.0, atol=1e-5)

    print("KERNEL_OK")
</pallas_src>

<mosaic_0001>
module attributes {stable_mosaic.version = 11 : i64} {
  func.func @_decoder_kernel(%arg0: i32, %arg1: memref<8x32xf32, #tpu.memory_space<vmem>>, %arg2: memref<32x64xf32, #tpu.memory_space<vmem>>, %arg3: memref<1x64xf32, #tpu.memory_space<vmem>>, %arg4: memref<64x64xf32, #tpu.memory_space<vmem>>, %arg5: memref<1x64xf32, #tpu.memory_space<vmem>>, %arg6: memref<64x128xf32, #tpu.memory_space<vmem>>, %arg7: memref<1x128xf32, #tpu.memory_space<vmem>>, %arg8: memref<8x128xf32, #tpu.memory_space<vmem>>) attributes {dimension_semantics = [#tpu.dimension_semantics<parallel>], iteration_bounds = array<i64: 4>, scalar_prefetch = 0 : i64, scratch_operands = 0 : i64, tpu.core_type = #tpu.core_type<tc>, window_params = [{transform_indices = @transform_0, window_bounds = array<i64: 8, 32>}, {pipeline_mode = #tpu.pipeline_mode<synchronous>, transform_indices = @transform_1, window_bounds = array<i64: 32, 64>}, {pipeline_mode = #tpu.pipeline_mode<synchronous>, transform_indices = @transform_2, window_bounds = array<i64: 1, 64>}, {pipeline_mode = #tpu.pipeline_mode<synchronous>, transform_indices = @transform_3, window_bounds = array<i64: 64, 64>}, {pipeline_mode = #tpu.pipeline_mode<synchronous>, transform_indices = @transform_4, window_bounds = array<i64: 1, 64>}, {pipeline_mode = #tpu.pipeline_mode<synchronous>, transform_indices = @transform_5, window_bounds = array<i64: 64, 128>}, {pipeline_mode = #tpu.pipeline_mode<synchronous>, transform_indices = @transform_6, window_bounds = array<i64: 1, 128>}, {transform_indices = @transform_7, window_bounds = array<i64: 8, 128>}]} {
    %c0 = arith.constant 0 : index
    %c0_0 = arith.constant 0 : index
    %0 = vector.load %arg1[%c0, %c0_0] : memref<8x32xf32, #tpu.memory_space<vmem>>, vector<8x32xf32>
    %c0_1 = arith.constant 0 : index
    %c0_2 = arith.constant 0 : index
    %1 = vector.load %arg2[%c0_1, %c0_2] : memref<32x64xf32, #tpu.memory_space<vmem>>, vector<32x64xf32>
    %cst = arith.constant dense<0.000000e+00> : vector<8x64xf32>
    %2 = tpu.matmul %0, %1, %cst {dimension_numbers = #tpu.dot_dimension_numbers<[1], [0], [0], [1], [0, 0, 1, 1], [], []>} : vector<8x32xf32>, vector<32x64xf32>, vector<8x64xf32> -> vector<8x64xf32>
    %c0_3 = arith.constant 0 : index
    %c0_4 = arith.constant 0 : index
    %3 = vector.load %arg3[%c0_3, %c0_4] : memref<1x64xf32, #tpu.memory_space<vmem>>, vector<1x64xf32>
    %4 = vector.broadcast %3 : vector<1x64xf32> to vector<8x64xf32>
    %5 = arith.addf %2, %4 : vector<8x64xf32>
    %cst_5 = arith.constant 0.000000e+00 : f32
    %6 = vector.broadcast %cst_5 : f32 to vector<8x64xf32>
    %7 = arith.maximumf %5, %6 : vector<8x64xf32>
    %c0_6 = arith.constant 0 : index
    %c0_7 = arith.constant 0 : index
    %8 = vector.load %arg4[%c0_6, %c0_7] : memref<64x64xf32, #tpu.memory_space<vmem>>, vector<64x64xf32>
    %cst_8 = arith.constant dense<0.000000e+00> : vector<8x64xf32>
    %9 = tpu.matmul %7, %8, %cst_8 {dimension_numbers = #tpu.dot_dimension_numbers<[1], [0], [0], [1], [0, 0, 1, 1], [], []>} : vector<8x64xf32>, vector<64x64xf32>, vector<8x64xf32> -> vector<8x64xf32>
    %c0_9 = arith.constant 0 : index
    %c0_10 = arith.constant 0 : index
    %10 = vector.load %arg5[%c0_9, %c0_10] : memref<1x64xf32, #tpu.memory_space<vmem>>, vector<1x64xf32>
    %11 = vector.broadcast %10 : vector<1x64xf32> to vector<8x64xf32>
    %12 = arith.addf %9, %11 : vector<8x64xf32>
    %cst_11 = arith.constant 0.000000e+00 : f32
    %13 = vector.broadcast %cst_11 : f32 to vector<8x64xf32>
    %14 = arith.maximumf %12, %13 : vector<8x64xf32>
    %c0_12 = arith.constant 0 : index
    %c0_13 = arith.constant 0 : index
    %15 = vector.load %arg6[%c0_12, %c0_13] : memref<64x128xf32, #tpu.memory_space<vmem>>, vector<64x128xf32>
    %cst_14 = arith.constant dense<0.000000e+00> : vector<8x128xf32>
    %16 = tpu.matmul %14, %15, %cst_14 {dimension_numbers = #tpu.dot_dimension_numbers<[1], [0], [0], [1], [0, 0, 1, 1], [], []>} : vector<8x64xf32>, vector<64x128xf32>, vector<8x128xf32> -> vector<8x128xf32>
    %c0_15 = arith.constant 0 : index
    %c0_16 = arith.constant 0 : index
    %17 = vector.load %arg7[%c0_15, %c0_16] : memref<1x128xf32, #tpu.memory_space<vmem>>, vector<1x128xf32>
    %18 = vector.broadcast %17 : vector<1x128xf32> to vector<8x128xf32>
    %19 = arith.addf %16, %18 : vector<8x128xf32>
    %20 = tpu.iota {dimensions = array<i32: 1>} : vector<8x128xi32>
    %c16_i32 = arith.constant 16 : i32
    %21 = vector.broadcast %c16_i32 : i32 to vector<8x128xi32>
    %22 = arith.cmpi slt, %20, %21 : vector<8x128xi32>
    %c16_i32_17 = arith.constant 16 : i32
    %23 = vector.broadcast %c16_i32_17 : i32 to vector<8x128xi32>
    %24 = arith.cmpi sge, %20, %23 : vector<8x128xi32>
    %c24_i32 = arith.constant 24 : i32
    %25 = vector.broadcast %c24_i32 : i32 to vector<8x128xi32>
    %26 = arith.cmpi slt, %20, %25 : vector<8x128xi32>
    %27 = arith.andi %24, %26 : vector<8x128xi1>
    %c24_i32_18 = arith.constant 24 : i32
    %28 = vector.broadcast %c24_i32_18 : i32 to vector<8x128xi32>
    %29 = arith.cmpi sge, %20, %28 : vector<8x128xi32>
    %c32_i32 = arith.constant 32 : i32
    %30 = vector.broadcast %c32_i32 : i32 to vector<8x128xi32>
    %31 = arith.cmpi slt, %20, %30 : vector<8x128xi32>
    %32 = arith.andi %29, %31 : vector<8x128xi1>
    %cst_19 = arith.constant 0xFF800000 : f32
    %33 = vector.broadcast %cst_19 : f32 to vector<8x128xf32>
    %34 = arith.select %27, %19, %33 : vector<8x128xi1>, vector<8x128xf32>
    %cst_20 = arith.constant dense<0xFF800000> : vector<8xf32>
    %35 = vector.multi_reduction <maximumf>, %34, %cst_20 [1] : vector<8x128xf32> to vector<8xf32>
    %36 = vector.shape_cast %35 : vector<8xf32> to vector<8x1xf32>
    %cst_21 = arith.constant 0xFF800000 : f32
    %37 = vector.broadcast %cst_21 : f32 to vector<8x128xf32>
    %38 = arith.select %32, %19, %37 : vector<8x128xi1>, vector<8x128xf32>
    %cst_22 = arith.constant dense<0xFF800000> : vector<8xf32>
    %39 = vector.multi_reduction <maximumf>, %38, %cst_22 [1] : vector<8x128xf32> to vector<8xf32>
    %40 = vector.shape_cast %39 : vector<8xf32> to vector<8x1xf32>
    %41 = vector.shape_cast %40 : vector<8x1xf32> to vector<8x1xf32>
    %42 = vector.broadcast %41 : vector<8x1xf32> to vector<8x128xf32>
    %43 = arith.select %32, %42, %19 : vector<8x128xi1>, vector<8x128xf32>
    %44 = vector.shape_cast %36 : vector<8x1xf32> to vector<8x1xf32>
    %45 = vector.broadcast %44 : vector<8x1xf32> to vector<8x128xf32>
    %46 = arith.select %27, %45, %43 : vector<8x128xi1>, vector<8x128xf32>
    %47 = arith.subf %19, %46 : vector<8x128xf32>
    %48 = math.exp %47 : vector<8x128xf32>
    %cst_23 = arith.constant 0.000000e+00 : f32
    %49 = vector.broadcast %cst_23 : f32 to vector<8x128xf32>
    %50 = arith.select %27, %48, %49 : vector<8x128xi1>, vector<8x128xf32>
    %cst_24 = arith.constant dense<0.000000e+00> : vector<8xf32>
    %51 = vector.multi_reduction <add>, %50, %cst_24 [1] : vector<8x128xf32> to vector<8xf32>
    %52 = vector.shape_cast %51 : vector<8xf32> to vector<8x1xf32>
    %cst_25 = arith.constant 0.000000e+00 : f32
    %53 = vector.broadcast %cst_25 : f32 to vector<8x128xf32>
    %54 = arith.select %32, %48, %53 : vector<8x128xi1>, vector<8x128xf32>
    %cst_26 = arith.constant dense<0.000000e+00> : vector<8xf32>
    %55 = vector.multi_reduction <add>, %54, %cst_26 [1] : vector<8x128xf32> to vector<8xf32>
    %56 = vector.shape_cast %55 : vector<8xf32> to vector<8x1xf32>
    %57 = tpu.reciprocal %52 {approx = true} : vector<8x1xf32> -> vector<8x1xf32>
    %58 = arith.mulf %52, %57 : vector<8x1xf32>
    %cst_27 = arith.constant 2.000000e+00 : f32
    %59 = vector.broadcast %cst_27 : f32 to vector<8x1xf32>
    %60 = arith.subf %59, %58 : vector<8x1xf32>
    %61 = arith.mulf %57, %60 : vector<8x1xf32>
    %62 = tpu.reciprocal %56 {approx = true} : vector<8x1xf32> -> vector<8x1xf32>
    %63 = arith.mulf %56, %62 : vector<8x1xf32>
    %cst_28 = arith.constant 2.000000e+00 : f32
    %64 = vector.broadcast %cst_28 : f32 to vector<8x1xf32>
    %65 = arith.subf %64, %63 : vector<8x1xf32>
    %66 = arith.mulf %62, %65 : vector<8x1xf32>
    %67 = vector.broadcast %61 : vector<8x1xf32> to vector<8x128xf32>
    %68 = arith.mulf %48, %67 : vector<8x128xf32>
    %69 = vector.broadcast %66 : vector<8x1xf32> to vector<8x128xf32>
    %70 = arith.mulf %48, %69 : vector<8x128xf32>
    %cst_29 = arith.constant 0.000000e+00 : f32
    %71 = vector.broadcast %cst_29 : f32 to vector<8x128xf32>
    %72 = arith.select %32, %70, %71 : vector<8x128xi1>, vector<8x128xf32>
    %73 = arith.select %27, %68, %72 : vector<8x128xi1>, vector<8x128xf32>
    %74 = arith.select %22, %19, %73 : vector<8x128xi1>, vector<8x128xf32>
    %c0_30 = arith.constant 0 : index
    %c0_31 = arith.constant 0 : index
    %75 = vector.load %arg8[%c0_30, %c0_31] : memref<8x128xf32, #tpu.memory_space<vmem>>, vector<8x128xf32>
    tpu.vector_store %arg8[%c0_30, %c0_31], %74 {strides = array<i32>} : memref<8x128xf32, #tpu.memory_space<vmem>>, vector<8x128xf32>,
    return
  }
  func.func @transform_0(%arg0: i32) -> (i32, i32) {
    %c0_i32 = arith.constant 0 : i32
    %c0_i32_0 = arith.constant 0 : i32
    return %arg0, %c0_i32 : i32, i32
  }
  func.func @transform_1(%arg0: i32) -> (i32, i32) {
    %c0_i32 = arith.constant 0 : i32
    %c0_i32_0 = arith.constant 0 : i32
    %c0_i32_1 = arith.constant 0 : i32
    return %c0_i32, %c0_i32_0 : i32, i32
  }
  func.func @transform_2(%arg0: i32) -> (i32, i32) {
    %c0_i32 = arith.constant 0 : i32
    %c0_i32_0 = arith.constant 0 : i32
    %c0_i32_1 = arith.constant 0 : i32
    return %c0_i32, %c0_i32_0 : i32, i32
  }
  func.func @transform_3(%arg0: i32) -> (i32, i32) {
    %c0_i32 = arith.constant 0 : i32
    %c0_i32_0 = arith.constant 0 : i32
    %c0_i32_1 = arith.constant 0 : i32
    return %c0_i32, %c0_i32_0 : i32, i32
  }
  func.func @transform_4(%arg0: i32) -> (i32, i32) {
    %c0_i32 = arith.constant 0 : i32
    %c0_i32_0 = arith.constant 0 : i32
    %c0_i32_1 = arith.constant 0 : i32
    return %c0_i32, %c0_i32_0 : i32, i32
  }
  func.func @transform_5(%arg0: i32) -> (i32, i32) {
    %c0_i32 = arith.constant 0 : i32
    %c0_i32_0 = arith.constant 0 : i32
    %c0_i32_1 = arith.constant 0 : i32
    return %c0_i32, %c0_i32_0 : i32, i32
  }
  func.func @transform_6(%arg0: i32) -> (i32, i32) {
    %c0_i32 = arith.constant 0 : i32
    %c0_i32_0 = arith.constant 0 : i32
    %c0_i32_1 = arith.constant 0 : i32
    return %c0_i32, %c0_i32_0 : i32, i32
  }
  func.func @transform_7(%arg0: i32) -> (i32, i32) {
    %c0_i32 = arith.constant 0 : i32
    %c0_i32_0 = arith.constant 0 : i32
    return %arg0, %c0_i32 : i32, i32
  }
}

</mosaic_0001>

<llo_original>
// kernel: tpu_custom_call.1
$region0: #{tpu_custom_call.1}
  #allocation0 [shape = 'u32[]', space=smem, size = 0x4, offset = 0x4, fixed_abs, tag = 'smem constant byte address 0x4 - core index']
  #allocation1 [shape = 'u32[72,128]{1,0:T(1,128)}', space=vmem, size = 0x9000, scoped, tag = 'internal scratch']
  %s0 = inlined_call_operand.hbm [shape: f32[32,32], index: 0, kind: input, shape index: {}]
  %s1 = inlined_call_operand.hbm [shape: f32[32,64], index: 1, kind: input, shape index: {}]
  %s2 = inlined_call_operand.vmem [shape: f32[1,64], index: 2, kind: input, shape index: {}]
  %s3 = inlined_call_operand.hbm [shape: f32[64,64], index: 3, kind: input, shape index: {}]
  %s4 = inlined_call_operand.vmem [shape: f32[1,64], index: 4, kind: input, shape index: {}]
  %s5 = inlined_call_operand.hbm [shape: f32[64,128], index: 5, kind: input, shape index: {}]
  %s6 = inlined_call_operand.vmem [shape: f32[1,128], index: 6, kind: input, shape index: {}]
  %s7 = inlined_call_operand.hbm [shape: f32[32,128], index: 7, kind: output, shape index: {}]
  %s8 = sld [smem:[#allocation0]]
  $region77: #{tpu_custom_call.1} parent=0
    _
  %s10 = ssub.s32 1, %s8
  %s11 = scalar_select 0, %s10, %s8
  $region1: #{tpu_custom_call.1} parent=0
    #allocation2 [shape = 'u8[8192]{0}', space=vmem, size = 0x2000, scoped, tag = 'input window, operand 0']
    #allocation3 [shape = 's32[2]{0}', space=sflag, size = 0x8, scoped, tag = 'scoped memory for tpu_custom_call.1']
    #allocation4 [shape = 's32[2]{0}', space=sflag, size = 0x8, scoped, tag = 'scoped memory for tpu_custom_call.1']
    #allocation5 [shape = 'u8[16384]{0}', space=vmem, size = 0x4000, scoped, tag = 'input window, operand 1, single buffered']
    #allocation6 [shape = 's32[1]{0}', space=sflag, size = 0x4, scoped, tag = 'scoped memory for tpu_custom_call.1']
    #allocation7 [shape = 'u8[32768]{0}', space=vmem, size = 0x8000, scoped, tag = 'input window, operand 3, single buffered']
    #allocation8 [shape = 'u8[32768]{0}', space=vmem, size = 0x8000, scoped, tag = 'input window, operand 5, single buffered']
    #allocation9 [shape = 's32[1]{0}', space=sflag, size = 0x4, scoped, tag = 'scoped memory for tpu_custom_call.1']
    #allocation10 [shape = 'u8[8192]{0}', space=vmem, size = 0x2000, scoped, tag = 'output window, operand 0']
    %12 = vsyncpa [#allocation3], 0
    %s13 = scalar_lea.sflag [#allocation3], 1
    %14 = vsyncpa %s13, 0
    %15 = vsyncpa [#allocation6], 0
    %16 = vsyncpa [#allocation9], 0
    %17 = vsyncpa [#allocation4], 0
    %s18 = scalar_lea.sflag [#allocation4], 1
    %19 = vsyncpa %s18, 0
    loop: start=0, step=1, limit=6
    $region2: #{tpu_custom_call.1} parent=1 // loop_pre_header
      _
    $region3: #{tpu_custom_call.1} parent=1 // loop_header
      %s21 = sphi 0, %s25
      %p22 = scmp.ge.s32.totalorder %s21, 6
      %s31 = sphi 0, %s33
      %s34 = sphi 0, %s31
      %s35 = sphi 0, %s34
      %s51 = sphi 0, %s35
      %s55 = sphi 0, %s55
      %s57 = sphi 0, %s55
      %s58 = sphi 0, %s57
      %s72 = sphi 0, %s58
      %s76 = sphi 0, %s76
      %s78 = sphi 0, %s76
      %s79 = sphi 0, %s78
      %s93 = sphi 0, %s79
      %s97 = sphi 0, %s97
      %s99 = sphi 0, %s97
      %s100 = sphi 0, %s99
      %s114 = sphi 0, %s100
      %s118 = sphi 0, %s118
      %s120 = sphi 0, %s118
      %s121 = sphi 0, %s120
      %s135 = sphi 0, %s121
      %s139 = sphi 0, %s139
      %s141 = sphi 0, %s139
      %s142 = sphi 0, %s141
      %s156 = sphi 0, %s142
      %s160 = sphi 0, %s160
      %s162 = sphi 0, %s160
      %s163 = sphi 0, %s162
      %s177 = sphi 0, %s163
      %s183 = sphi 0, %s185
      %s186 = sphi 0, %s183
      %s187 = sphi 0, %s186
      %s203 = sphi 0, %s187
    $region4: #{tpu_custom_call.1} parent=1 // loop_header_branch
      %24 = sbr.rel (%p22) target = $region8
    $region5: #{tpu_custom_call.1} parent=1 // loop_body
      %s26 = ssub.s32 %s21, 1
      %s27 = ssub.s32 %s21, 2
      %s28 = sadd.s32 %s21, 1
      %s29 = ssub.s32 %s21, %s28
      %p30 = scmp.eq.s32.totalorder %s29, 0
      %s32 = sadd.s32 %s31, 1
      %s33 = scalar_select %p30, %s31, %s32
      %p36 = pneg %p30
      %p37 = scmp.eq.s32.totalorder %s21, 3
      %p38 = por %p36, %p37
      %p39 = scmp.ne.s32.totalorder %s31, %s34
      %p40 = scmp.eq.s32.totalorder %s21, 0
      %p41 = por %p39, %p40
      %p42 = scmp.ne.s32.totalorder %s31, %s34
      %p43 = scmp.eq.s32.totalorder %s26, 3
      %p44 = por %p42, %p43
      %p45 = scmp.ne.s32.totalorder %s34, %s35
      %p46 = scmp.eq.s32.totalorder %s26, 0
      %p47 = por %p45, %p46
      %p48 = scmp.ne.s32.totalorder %s34, %s35
      %p49 = scmp.eq.s32.totalorder %s27, 3
      %p50 = por %p48, %p49
      %p52 = scmp.ne.s32.totalorder %s35, %s51
      %p53 = scmp.eq.s32.totalorder %s27, 0
      %p54 = por %p52, %p53
      %s56 = sadd.s32 %s55, 1
      %p59 = scmp.eq.s32.totalorder %s21, 3
      %p60 = scmp.ne.s32.totalorder %s55, %s57
      %p61 = scmp.eq.s32.totalorder %s21, 0
      %p62 = por %p60, %p61
      %p63 = scmp.ne.s32.totalorder %s55, %s57
      %p64 = scmp.eq.s32.totalorder %s26, 3
      %p65 = por %p63, %p64
      %p66 = scmp.ne.s32.totalorder %s57, %s58
      %p67 = scmp.eq.s32.totalorder %s26, 0
      %p68 = por %p66, %p67
      %p69 = scmp.ne.s32.totalorder %s57, %s58
      %p70 = scmp.eq.s32.totalorder %s27, 3
      %p71 = por %p69, %p70
      %p73 = scmp.ne.s32.totalorder %s58, %s72
      %p74 = scmp.eq.s32.totalorder %s27, 0
      %p75 = por %p73, %p74
      %s77 = sadd.s32 %s76, 1
      %p80 = scmp.eq.s32.totalorder %s21, 3
      %p81 = scmp.ne.s32.totalorder %s76, %s78
      %p82 = scmp.eq.s32.totalorder %s21, 0
      %p83 = por %p81, %p82
      %p84 = scmp.ne.s32.totalorder %s76, %s78
      %p85 = scmp.eq.s32.totalorder %s26, 3
      %p86 = por %p84, %p85
      %p87 = scmp.ne.s32.totalorder %s78, %s79
      %p88 = scmp.eq.s32.totalorder %s26, 0
      %p89 = por %p87, %p88
      %p90 = scmp.ne.s32.totalorder %s78, %s79
      %p91 = scmp.eq.s32.totalorder %s27, 3
      %p92 = por %p90, %p91
      %p94 = scmp.ne.s32.totalorder %s79, %s93
      %p95 = scmp.eq.s32.totalorder %s27, 0
      %p96 = por %p94, %p95
      %s98 = sadd.s32 %s97, 1
      %p101 = scmp.eq.s32.totalorder %s21, 3
      %p102 = scmp.ne.s32.totalorder %s97, %s99
      %p103 = scmp.eq.s32.totalorder %s21, 0
      %p104 = por %p102, %p103
      %p105 = scmp.ne.s32.totalorder %s97, %s99
      %p106 = scmp.eq.s32.totalorder %s26, 3
      %p107 = por %p105, %p106
      %p108 = scmp.ne.s32.totalorder %s99, %s100
      %p109 = scmp.eq.s32.totalorder %s26, 0
      %p110 = por %p108, %p109
      %p111 = scmp.ne.s32.totalorder %s99, %s100
      %p112 = scmp.eq.s32.totalorder %s27, 3
      %p113 = por %p111, %p112
      %p115 = scmp.ne.s32.totalorder %s100, %s114
      %p116 = scmp.eq.s32.totalorder %s27, 0
      %p117 = por %p115, %p116
      %s119 = sadd.s32 %s118, 1
      %p122 = scmp.eq.s32.totalorder %s21, 3
      %p123 = scmp.ne.s32.totalorder %s118, %s120
      %p124 = scmp.eq.s32.totalorder %s21, 0
      %p125 = por %p123, %p124
      %p126 = scmp.ne.s32.totalorder %s118, %s120
      %p127 = scmp.eq.s32.totalorder %s26, 3
      %p128 = por %p126, %p127
      %p129 = scmp.ne.s32.totalorder %s120, %s121
      %p130 = scmp.eq.s32.totalorder %s26, 0
      %p131 = por %p129, %p130
      %p132 = scmp.ne.s32.totalorder %s120, %s121
      %p133 = scmp.eq.s32.totalorder %s27, 3
      %p134 = por %p132, %p133
      %p136 = scmp.ne.s32.totalorder %s121, %s135
      %p137 = scmp.eq.s32.totalorder %s27, 0
      %p138 = por %p136, %p137
      %s140 = sadd.s32 %s139, 1
      %p143 = scmp.eq.s32.totalorder %s21, 3
      %p144 = scmp.ne.s32.totalorder %s139, %s141
      %p145 = scmp.eq.s32.totalorder %s21, 0
      %p146 = por %p144, %p145
      %p147 = scmp.ne.s32.totalorder %s139, %s141
      %p148 = scmp.eq.s32.totalorder %s26, 3
      %p149 = por %p147, %p148
      %p150 = scmp.ne.s32.totalorder %s141, %s142
      %p151 = scmp.eq.s32.totalorder %s26, 0
      %p152 = por %p150, %p151
      %p153 = scmp.ne.s32.totalorder %s141, %s142
      %p154 = scmp.eq.s32.totalorder %s27, 3
      %p155 = por %p153, %p154
      %p157 = scmp.ne.s32.totalorder %s142, %s156
      %p158 = scmp.eq.s32.totalorder %s27, 0
      %p159 = por %p157, %p158
      %s161 = sadd.s32 %s160, 1
      %p164 = scmp.eq.s32.totalorder %s21, 3
      %p165 = scmp.ne.s32.totalorder %s160, %s162
      %p166 = scmp.eq.s32.totalorder %s21, 0
      %p167 = por %p165, %p166
      %p168 = scmp.ne.s32.totalorder %s160, %s162
      %p169 = scmp.eq.s32.totalorder %s26, 3
      %p170 = por %p168, %p169
      %p171 = scmp.ne.s32.totalorder %s162, %s163
      %p172 = scmp.eq.s32.totalorder %s26, 0
      %p173 = por %p171, %p172
      %p174 = scmp.ne.s32.totalorder %s162, %s163
      %p175 = scmp.eq.s32.totalorder %s27, 3
      %p176 = por %p174, %p175
      %p178 = scmp.ne.s32.totalorder %s163, %s177
      %p179 = scmp.eq.s32.totalorder %s27, 0
      %p180 = por %p178, %p179
      %s181 = ssub.s32 %s21, %s28
      %p182 = scmp.eq.s32.totalorder %s181, 0
      %s184 = sadd.s32 %s183, 1
      %s185 = scalar_select %p182, %s183, %s184
      %p188 = pneg %p182
      %p189 = scmp.eq.s32.totalorder %s21, 3
      %p190 = por %p188, %p189
      %p191 = scmp.ne.s32.totalorder %s183, %s186
      %p192 = scmp.eq.s32.totalorder %s21, 0
      %p193 = por %p191, %p192
      %p194 = scmp.ne.s32.totalorder %s183, %s186
      %p195 = scmp.eq.s32.totalorder %s26, 3
      %p196 = por %p194, %p195
      %p197 = scmp.ne.s32.totalorder %s186, %s187
      %p198 = scmp.eq.s32.totalorder %s26, 0
      %p199 = por %p197, %p198
      %p200 = scmp.ne.s32.totalorder %s186, %s187
      %p201 = scmp.eq.s32.totalorder %s27, 3
      %p202 = por %p200, %p201
      %p204 = scmp.ne.s32.totalorder %s187, %s203
      %p205 = scmp.eq.s32.totalorder %s27, 0
      %p206 = por %p204, %p205
      %p207 = scmp.le.s32.totalorder 1, %s21
      %p208 = scmp.lt.s32.totalorder %s21, 5
      %p209 = pnand %p207, %p208
      %p210 = pneg %p209
      // Predicated region
      $region9: #{tpu_custom_call.1} parent=5 // pred_check
        _
      $region10: #{tpu_custom_call.1} parent=5 // pred_check_branch
        %212 = sbr.rel (%p209) target = $region12
      $region11: #{tpu_custom_call.1} parent=5 // pred_region
        %s213 = ssub.s32 %s21, 1
        // Predicated region
        $region13: #{tpu_custom_call.1} parent=11 // pred_check
          %p214 = pneg %p68
        $region14: #{tpu_custom_call.1} parent=11 // pred_check_branch
          %216 = sbr.rel (%p214) target = $region16
        $region15: #{tpu_custom_call.1} parent=11 // pred_region
          %218 = vsyncadd [#allocation6], 0
          %s219 = sshll.u32 %s1, 4
          %s220 = int_to_ptr.hbm [resolvable:$true] %s219
          %s221 = sshll.u32 [#allocation5], 4
          %s222 = int_to_ptr.vmem [resolvable:$true] %s221
          %227 = dma.hbm_to_vmem [thread:$0]  %s220, 512, %s222, [#allocation6], 128, 128, 8
        $region16: #{tpu_custom_call.1} parent=11 // pred_fallthru
          _
        // Predicated region
        $region17: #{tpu_custom_call.1} parent=11 // pred_check
          %p228 = pneg %p89
        $region18: #{tpu_custom_call.1} parent=11 // pred_check_branch
          %230 = sbr.rel (%p228) target = $region20
        $region19: #{tpu_custom_call.1} parent=11 // pred_region
          _
        $region20: #{tpu_custom_call.1} parent=11 // pred_fallthru
          _
        // Predicated region
        $region21: #{tpu_custom_call.1} parent=11 // pred_check
          %p231 = pneg %p110
        $region22: #{tpu_custom_call.1} parent=11 // pred_check_branch
          %233 = sbr.rel (%p231) target = $region24
        $region23: #{tpu_custom_call.1} parent=11 // pred_region
          %235 = vsyncadd [#allocation6], 0
          %s236 = sshll.u32 %s3, 4
          %s237 = int_to_ptr.hbm [resolvable:$true] %s236
          %s238 = sshll.u32 [#allocation7], 4
          %s239 = int_to_ptr.vmem [resolvable:$true] %s238
          %244 = dma.hbm_to_vmem [thread:$0]  %s237, 1024, %s239, [#allocation6], 128, 128, 8
        $region24: #{tpu_custom_call.1} parent=11 // pred_fallthru
          _
        // Predicated region
        $region25: #{tpu_custom_call.1} parent=11 // pred_check
          %p245 = pneg %p131
        $region26: #{tpu_custom_call.1} parent=11 // pred_check_branch
          %247 = sbr.rel (%p245) target = $region28
        $region27: #{tpu_custom_call.1} parent=11 // pred_region
          _
        $region28: #{tpu_custom_call.1} parent=11 // pred_fallthru
          _
        // Predicated region
        $region29: #{tpu_custom_call.1} parent=11 // pred_check
          %p248 = pneg %p152
        $region30: #{tpu_custom_call.1} parent=11 // pred_check_branch
          %250 = sbr.rel (%p248) target = $region32
        $region31: #{tpu_custom_call.1} parent=11 // pred_region
          %252 = vsyncadd [#allocation9], 0
          %s253 = sshll.u32 %s5, 4
          %s254 = int_to_ptr.hbm [resolvable:$true] %s253
          %s255 = sshll.u32 [#allocation8], 4
          %s256 = int_to_ptr.vmem [resolvable:$true] %s255
          %261 = dma.hbm_to_vmem [thread:$0]  %s254, 1024, %s256, [#allocation9], 128, 128, 8
        $region32: #{tpu_custom_call.1} parent=11 // pred_fallthru
          _
        // Predicated region
        $region33: #{tpu_custom_call.1} parent=11 // pred_check
          %p262 = pneg %p173
        $region34: #{tpu_custom_call.1} parent=11 // pred_check_branch
          %264 = sbr.rel (%p262) target = $region36
        $region35: #{tpu_custom_call.1} parent=11 // pred_region
          _
        $region36: #{tpu_custom_call.1} parent=11 // pred_fallthru
          _
      $region12: #{tpu_custom_call.1} parent=5 // pred_fallthru
        _
      %p265 = scmp.lt.s32.totalorder %s21, 4
      // Predicated region
      $region37: #{tpu_custom_call.1} parent=5 // pred_check
        %p266 = pneg %p265
      $region38: #{tpu_custom_call.1} parent=5 // pred_check_branch
        %268 = sbr.rel (%p266) target = $region40
      $region39: #{tpu_custom_call.1} parent=5 // pred_region
        // Predicated region
        $region41: #{tpu_custom_call.1} parent=39 // pred_check
          %p269 = pneg %p41
        $region42: #{tpu_custom_call.1} parent=39 // pred_check_branch
          %271 = sbr.rel (%p269) target = $region44
        $region43: #{tpu_custom_call.1} parent=39 // pred_region
          %s272 = sand.u32 %s31, 1
          %s273 = scalar_lea.sflag [#allocation3], %s272
          %s274 = sand.u32 %s31, 1
          %s275 = smul.addr %s274, 8
          %s276 = scalar_lea.vmem [#allocation2], %s275
          %278 = vsyncadd %s273, 0
          %s279 = smul.addr %s21, 8
          %s280 = scalar_lea.hbm %s0, %s279
          %s282 = sshll.u32 %s280, 4
          %s283 = int_to_ptr.hbm [resolvable:$true] %s282
          %s284 = sshll.u32 %s276, 4
          %s285 = int_to_ptr.vmem [resolvable:$true] %s284
          %287 = dma.hbm_to_vmem [thread:$0]  %s283, 128, %s285, %s273
        $region44: #{tpu_custom_call.1} parent=39 // pred_fallthru
          _
      $region40: #{tpu_custom_call.1} parent=5 // pred_fallthru
        _
      %p288 = scmp.le.s32.totalorder 1, %s21
      %p289 = scmp.lt.s32.totalorder %s21, 5
      %p290 = pnand %p288, %p289
      %p291 = pneg %p290
      // Predicated region
      $region45: #{tpu_custom_call.1} parent=5 // pred_check
        _
      $region46: #{tpu_custom_call.1} parent=5 // pred_check_branch
        %293 = sbr.rel (%p290) target = $region48
      $region47: #{tpu_custom_call.1} parent=5 // pred_region
        %s294 = ssub.s32 %s21, 1
        %s295 = sand.u32 %s34, 1
        %s296 = scalar_lea.sflag [#allocation3], %s295
        %s297 = sand.u32 %s34, 1
        %s298 = smul.addr %s297, 8
        %s299 = scalar_lea.vmem [#allocation2], %s298
        // Predicated region
        $region49: #{tpu_custom_call.1} parent=47 // pred_check
          %p300 = pneg %p47
        $region50: #{tpu_custom_call.1} parent=47 // pred_check_branch
          %302 = sbr.rel (%p300) target = $region52
        $region51: #{tpu_custom_call.1} parent=47 // pred_region
          %304 = dma.done %s296, 128
        $region52: #{tpu_custom_call.1} parent=47 // pred_fallthru
          _
        // Predicated region
        $region53: #{tpu_custom_call.1} parent=47 // pred_check
          %p305 = pneg %p68
        $region54: #{tpu_custom_call.1} parent=47 // pred_check_branch
          %307 = sbr.rel (%p305) target = $region56
        $region55: #{tpu_custom_call.1} parent=47 // pred_region
          %309 = dma.done [#allocation6], 512
        $region56: #{tpu_custom_call.1} parent=47 // pred_fallthru
          _
        // Predicated region
        $region57: #{tpu_custom_call.1} parent=47 // pred_check
          %p310 = pneg %p110
        $region58: #{tpu_custom_call.1} parent=47 // pred_check_branch
          %312 = sbr.rel (%p310) target = $region60
        $region59: #{tpu_custom_call.1} parent=47 // pred_region
          %314 = dma.done [#allocation6], 1024
        $region60: #{tpu_custom_call.1} parent=47 // pred_fallthru
          _
        // Predicated region
        $region61: #{tpu_custom_call.1} parent=47 // pred_check
          %p315 = pneg %p152
        $region62: #{tpu_custom_call.1} parent=47 // pred_check_branch
          %317 = sbr.rel (%p315) target = $region64
        $region63: #{tpu_custom_call.1} parent=47 // pred_region
          %319 = dma.done [#allocation9], 1024
        $region64: #{tpu_custom_call.1} parent=47 // pred_fallthru
          _
        %s320 = sand.u32 %s34, 1
        %s321 = scalar_lea.sflag [#allocation3], %s320
        %s322 = sand.u32 %s34, 1
        %s323 = smul.addr %s322, 8
        %s324 = scalar_lea.vmem [#allocation2], %s323
        %p325 = pneg %p47
        %p326 = pneg %p44
        %p327 = pneg %p68
        %p328 = pneg %p65
        %p329 = pneg %p89
        %p330 = pneg %p86
        %p331 = pneg %p110
        %p332 = pneg %p107
        %p333 = pneg %p131
        %p334 = pneg %p128
        %p335 = pneg %p152
        %p336 = pneg %p149
        %p337 = pneg %p173
        %p338 = pneg %p170
        %p339 = pneg %p199
        %p340 = pneg %p196
        %s341 = sand.u32 %s186, 1
        %s342 = scalar_lea.sflag [#allocation4], %s341
        %s343 = sand.u32 %s186, 1
        %s344 = smul.addr %s343, 8
        %s345 = scalar_lea.vmem [#allocation10], %s344
        %v346 = vld [vmem:[%s299] sm:$0xff]
        %v347 = vld [vmem:[#allocation5] sm:$0xff]
        %v348 = vld [vmem:[#allocation5 + $0x8] sm:$0xff]
        %v349 = vld [vmem:[#allocation5 + $0x10] sm:$0xff]
        %v350 = vld [vmem:[#allocation5 + $0x18] sm:$0xff]
        %v351 = vld [vmem:[%s2] sm:$0x1]
        %v353 = vperm.slane %v351, 0
        %vm355 = vcmask 261120
        %v357 = vsel %vm355, %v346, 0
        %359 = vmatpush.msra.mxu0 0.0
        %360 = vmatpush.msra.mxu0 0.0
        %361 = vmatpush.msra.mxu0 0.0
        %362 = vmatpush.msra.mxu0 0.0
        %363 = vmatpush.msra.mxu0 0.0
        %364 = vmatpush.msra.mxu0 0.0
        %365 = vmatpush.msra.mxu0 0.0
        %366 = vmatpush.msra.mxu0 0.0
        %367 = vmatpush.msra.mxu0 0.0
        %368 = vmatpush.msra.mxu0 0.0
        %369 = vmatpush.msra.mxu0 0.0
        %370 = vmatpush.msra.mxu0 0.0
        %371 = vmatpush.msra.mxu0 %v350
        %372 = vmatpush.msra.mxu0 %v349
        %373 = vmatpush.msra.mxu0 %v348
        %374 = vmatpush.msra.mxu0 %v347
        %375 = vmatmul.f32.gmra.mxu0 %v357
        %v376 = vpop.f32.mrf.mxu0
        %v377 = vadd.f32 %v353, %v376
        %378 = vdwg.mxu0
        %v379 = vmax.f32 %v377, 0.0
        %v380 = vld [vmem:[#allocation7] sm:$0xff]
        %v381 = vld [vmem:[#allocation7 + $0x8] sm:$0xff]
        %v382 = vld [vmem:[#allocation7 + $0x10] sm:$0xff]
        %v383 = vld [vmem:[#allocation7 + $0x18] sm:$0xff]
        %v384 = vld [vmem:[#allocation7 + $0x20] sm:$0xff]
        %v385 = vld [vmem:[#allocation7 + $0x28] sm:$0xff]
        %v386 = vld [vmem:[#allocation7 + $0x30] sm:$0xff]
        %v387 = vld [vmem:[#allocation7 + $0x38] sm:$0xff]
        %v388 = vld [vmem:[%s4] sm:$0x1]
        %v390 = vperm.slane %v388, 0
        %vm392 = vcmask 523264
        %v394 = vsel %vm392, %v379, 0
        %396 = vmatpush.msra.mxu0 0.0
        %397 = vmatpush.msra.mxu0 0.0
        %398 = vmatpush.msra.mxu0 0.0
        %399 = vmatpush.msra.mxu0 0.0
        %400 = vmatpush.msra.mxu0 0.0
        %401 = vmatpush.msra.mxu0 0.0
        %402 = vmatpush.msra.mxu0 0.0
        %403 = vmatpush.msra.mxu0 0.0
        %404 = vmatpush.msra.mxu0 %v387
        %405 = vmatpush.msra.mxu0 %v386
        %406 = vmatpush.msra.mxu0 %v385
        %407 = vmatpush.msra.mxu0 %v384
        %408 = vmatpush.msra.mxu0 %v383
        %409 = vmatpush.msra.mxu0 %v382
        %410 = vmatpush.msra.mxu0 %v381
        %411 = vmatpush.msra.mxu0 %v380
        %412 = vmatmul.f32.gmra.mxu0 %v394
        %v413 = vpop.f32.mrf.mxu0
        %v414 = vadd.f32 %v390, %v413
        %415 = vdwg.mxu0
        %v416 = vmax.f32 %v414, 0.0
        %v417 = vld [vmem:[#allocation8] sm:$0xff]
        %v418 = vld [vmem:[#allocation8 + $0x8] sm:$0xff]
        %v419 = vld [vmem:[#allocation8 + $0x10] sm:$0xff]
        %v420 = vld [vmem:[#allocation8 + $0x18] sm:$0xff]
        %v421 = vld [vmem:[#allocation8 + $0x20] sm:$0xff]
        %v422 = vld [vmem:[#allocation8 + $0x28] sm:$0xff]
        %v423 = vld [vmem:[#allocation8 + $0x30] sm:$0xff]
        %v424 = vld [vmem:[#allocation8 + $0x38] sm:$0xff]
        %v425 = vld [vmem:[%s6] sm:$0x1]
        %v427 = vperm.slane %v425, 0
        %v430 = vsel %vm392, %v416, 0
        %432 = vmatpush.msra.mxu0 0.0
        %433 = vmatpush.msra.mxu0 0.0
        %434 = vmatpush.msra.mxu0 0.0
        %435 = vmatpush.msra.mxu0 0.0
        %436 = vmatpush.msra.mxu0 0.0
        %437 = vmatpush.msra.mxu0 0.0
        %438 = vmatpush.msra.mxu0 0.0
        %439 = vmatpush.msra.mxu0 0.0
        %440 = vmatpush.msra.mxu0 %v424
        %441 = vmatpush.msra.mxu0 %v423
        %442 = vmatpush.msra.mxu0 %v422
        %443 = vmatpush.msra.mxu0 %v421
        %444 = vmatpush.msra.mxu0 %v420
        %445 = vmatpush.msra.mxu0 %v419
        %446 = vmatpush.msra.mxu0 %v418
        %447 = vmatpush.msra.mxu0 %v417
        %448 = vmatmul.f32.gmra.mxu0 %v430
        %v449 = vpop.f32.mrf.mxu0
        %v450 = vadd.f32 %v427, %v449
        %451 = vdwg.mxu0
        %v452 = vlaneseq
        %v453 = vand.u32 %v452, 127
        %vm454 = vcmp.lt.s32.totalorder %v453, 16
        %vm455 = vcmp.ge.s32.totalorder %v453, 16
        %vm456 = vcmp.lt.s32.totalorder %v453, 24
        %vm457 = vmand %vm455, %vm456
        %vm458 = vcmp.ge.s32.totalorder %v453, 24
        %vm459 = vcmp.lt.s32.totalorder %v453, 32
        %vm460 = vmand %vm458, %vm459
        %v461 = vsel %vm457, %v450, -inf
        %462 = vmax.xlane.f32.xlu0 %v461
        %v463 = vpop.xlane.xlu0 %462
        %v464 = vsel %vm460, %v450, -inf
        %465 = vmax.xlane.f32.xlu0 %v464
        %v466 = vpop.xlane.xlu0 %465
        %v467 = vsel %vm460, %v466, %v450
        %v468 = vsel %vm457, %v463, %v467
        %v469 = vsub.f32 %v450, %v468
        %v470 = vmul.f32 %v469, 1.442695
        %v471 = vpow.pop %v470
        %v472 = vsel %vm457, %v471, 0.0
        %473 = vadd.xlane.f32.xlu0 %v472
        %v474 = vpop.xlane.xlu0 %473
        %v475 = vsel %vm460, %v471, 0.0
        %476 = vadd.xlane.f32.xlu0 %v475
        %v477 = vpop.xlane.xlu0 %476
        %v478 = vrcp.pop %v474
        %v479 = vmul.f32 %v474, %v478
        %v480 = vsub.f32 2.0, %v479
        %v481 = vmul.f32 %v478, %v480
        %v482 = vrcp.pop %v477
        %v483 = vmul.f32 %v477, %v482
        %v484 = vsub.f32 2.0, %v483
        %v485 = vmul.f32 %v482, %v484
        %v486 = vmul.f32 %v471, %v481
        %v487 = vmul.f32 %v471, %v485
        %v488 = vsel %vm460, %v487, 0.0
        %v489 = vsel %vm457, %v486, %v488
        %v490 = vsel %vm454, %v450, %v489
        %491 = vst [vmem:[%s345] sm:$0xff] %v490
        %s492 = sand.u32 %s186, 1
        %s493 = scalar_lea.sflag [#allocation4], %s492
        %s494 = sand.u32 %s186, 1
        %s495 = smul.addr %s494, 8
        %s496 = scalar_lea.vmem [#allocation10], %s495
        // Predicated region
        $region65: #{tpu_custom_call.1} parent=47 // pred_check
          %p497 = pneg %p196
        $region66: #{tpu_custom_call.1} parent=47 // pred_check_branch
          %499 = sbr.rel (%p497) target = $region68
        $region67: #{tpu_custom_call.1} parent=47 // pred_region
          %501 = vsyncadd %s493, 0
          %s502 = smul.addr %s26, 8
          %s503 = scalar_lea.hbm %s7, %s502
          %s505 = sshll.u32 %s496, 4
          %s506 = int_to_ptr.vmem [resolvable:$true] %s505
          %s507 = sshll.u32 %s503, 4
          %s508 = int_to_ptr.hbm [resolvable:$true] %s507
          %510 = dma.vmem_to_hbm [thread:$0]  %s506, 128, %s508, %s493
        $region68: #{tpu_custom_call.1} parent=47 // pred_fallthru
          _
      $region48: #{tpu_custom_call.1} parent=5 // pred_fallthru
        _
      %p511 = scmp.le.s32.totalorder 2, %s21
      // Predicated region
      $region69: #{tpu_custom_call.1} parent=5 // pred_check
        %p512 = pneg %p511
      $region70: #{tpu_custom_call.1} parent=5 // pred_check_branch
        %514 = sbr.rel (%p512) target = $region72
      $region71: #{tpu_custom_call.1} parent=5 // pred_region
        %s515 = ssub.s32 %s21, 2
        // Predicated region
        $region73: #{tpu_custom_call.1} parent=71 // pred_check
          %p516 = pneg %p202
        $region74: #{tpu_custom_call.1} parent=71 // pred_check_branch
          %518 = sbr.rel (%p516) target = $region76
        $region75: #{tpu_custom_call.1} parent=71 // pred_region
          %s519 = sand.u32 %s187, 1
          %s520 = scalar_lea.sflag [#allocation4], %s519
          %s521 = sand.u32 %s187, 1
          %s522 = smul.addr %s521, 8
          %s523 = scalar_lea.vmem [#allocation10], %s522
          %525 = dma.done %s520, 128
        $region76: #{tpu_custom_call.1} parent=71 // pred_fallthru
          _
      $region72: #{tpu_custom_call.1} parent=5 // pred_fallthru
        _
    $region6: #{tpu_custom_call.1} parent=1 // loop_footer
      %s25 = sadd.s32 1, %s21
    $region7: #{tpu_custom_call.1} parent=1 // loop_footer_branch
      %20 = sbr.rel target = $region3
    $region8: #{tpu_custom_call.1} parent=1 // loop_exit
      _
    %526 = vsyncpa [#allocation3], 1
    %s527 = scalar_lea.sflag [#allocation3], 1
    %528 = vsyncpa %s527, 1
    %529 = vsyncpa [#allocation6], 1
    %530 = vsyncpa [#allocation9], 1
    %531 = vsyncpa [#allocation4], 1
    %s532 = scalar_lea.sflag [#allocation4], 1
    %533 = vsyncpa %s532, 1

</llo_original>
